<compile_context>
chip_gen: v7x
topology: tpu7x:2x2x1
jax: 0.10.0
libtpu: 0.0.40
codegen_flags: <defaults>
</compile_context>

<pallas_src>
import math

import jax
import jax.numpy as jnp
from jax import lax
from jax.experimental import pallas as pl
from jax.experimental.pallas import tpu as pltpu


def build_ffm_buffer(mode: str, L: int, num_input: int) -> jnp.ndarray:
    """Reproduce the `ffmModule` buffer from BasicFFM.__init__ (shape (1, 2*L*numInput))."""
    steps = jnp.arange(L, dtype=jnp.float32)
    if mode == "linear":
        vals = 0.5 * (steps + 1.0) * jnp.pi          # 0.5 * (l+1) * pi per frequency block
    elif mode == "loglinear":
        vals = (2.0 ** steps) * jnp.pi               # 2**l * pi per frequency block
    else:
        raise ValueError(f"unknown mode {mode!r}")
    ffm = jnp.repeat(vals, 2 * num_input)            # constant over each 2*num_input block
    return ffm.reshape(1, 2 * L * num_input)


def build_phase_buffer(L: int, num_input: int) -> jnp.ndarray:
    """Phase bias: 0 on sin columns (j%4 < 2), pi/2 on cos columns (cos(t)=sin(t+pi/2))."""
    two_ln = 2 * L * num_input
    col = jnp.arange(two_ln)
    phase = jnp.where((col % 4) < 2, 0.0, 0.5 * jnp.pi).astype(jnp.float32)
    return phase.reshape(1, two_ln)


def _round_up(v: int, m: int) -> int:
    return (v + m - 1) // m * m


def _ffm_kernel(x_ref, m_ref, o_ref):
    # x_ref: (TB, K)     packed + augmented rows: [x_0 .. x_{pack-1} | 1 | 0-pad], f32
    # m_ref: (K, fdim)   constant frequency/phase selection matrix, f32
    # o_ref: (TB, fdim)  lane-dense output tile (fdim is a multiple of 128)
    y = jnp.dot(x_ref[...], m_ref[...],
                preferred_element_type=jnp.float32,
                precision=lax.Precision.HIGHEST)      # keep x / freqs at f32 on the MXU
    o_ref[...] = jnp.sin(y).astype(o_ref.dtype)       # single transcendental per element


def make_basic_ffm(mode: str, L: int, num_input: int, *,
                   out_dtype=None,
                   max_rows_per_tile: int = 1024,
                   vmem_tile_budget_bytes: int = 10 << 20):
    two_ln = 2 * L * num_input
    ffm = build_ffm_buffer(mode, L, num_input)        # (1, two_ln) f32
    phase = build_phase_buffer(L, num_input)          # (1, two_ln) f32

    # Row-packing factor: smallest P with P*two_ln a multiple of 128 lanes.
    # two_ln is always even, so P <= 64.  P original rows are packed per kernel row.
    pack = 128 // math.gcd(two_ln, 128)
    xdim = pack * num_input
    fdim = pack * two_ln                              # multiple of 128 (lane-dense output)
    K = _round_up(xdim + 1, 8)                        # x columns + ones column + zero pad

    # Constant matrix:  y[:, j] = x[:, in_col(j)] * freq(j) + phase(j)
    j = jnp.arange(fdim)
    q = j % two_ln                                    # column in the unpacked output
    p = j // two_ln                                   # which packed batch row it belongs to
    in_col = p * num_input + (q % num_input)          # which packed-x column feeds column j
    mat = jnp.zeros((K, fdim), jnp.float32)
    mat = mat.at[in_col, j].set(ffm.reshape(-1)[q])   # frequency on the selected x row
    mat = mat.at[xdim, j].set(phase.reshape(-1)[q])   # ones-column row carries the phase

    def forward(x: jnp.ndarray) -> jnp.ndarray:
        B, n_in = x.shape
        assert n_in == num_input, (n_in, num_input)
        odt = x.dtype if out_dtype is None else jnp.dtype(out_dtype)
        out_itemsize = jnp.dtype(odt).itemsize

        # Pad batch so it packs evenly, then pad packed rows to a multiple of 8 sublanes.
        b1 = _round_up(B, pack)
        xpad = jnp.pad(x.astype(jnp.float32), ((0, b1 - B), (0, 0)))
        bp = b1 // pack
        bp_pad = _round_up(bp, 8)
        xp = xpad.reshape(bp, xdim)                   # free: row-major (B, n) -> (B/P, P*n)
        x_aug = jnp.concatenate(
            [xp,
             jnp.ones((bp, 1), jnp.float32),
             jnp.zeros((bp, K - xdim - 1), jnp.float32)], axis=1)
        x_aug = jnp.pad(x_aug, ((0, bp_pad - bp), (0, 0)))

        # Rows per tile: budget covers double-buffered I/O tiles PLUS ~2 output-sized f32
        # temporaries (y and the pre-cast sin result); M is resident (double-buffered).
        bytes_per_row = 2 * 4 * K + (2 * out_itemsize + 2 * 4) * fdim
        const_bytes = 2 * 4 * K * fdim
        avail = max(vmem_tile_budget_bytes - const_bytes, 8 * bytes_per_row)
        tb = min(max_rows_per_tile, avail // bytes_per_row)
        if bp_pad > 8:
            # keep >= 2 grid steps: DMA/compute pipelining + v7x megacore sharding
            tb = min(tb, max(8, ((bp_pad + 1) // 2) // 8 * 8))
        tb = max(8, tb // 8 * 8)
        tb = min(tb, bp_pad)
        grid = (pl.cdiv(bp_pad, tb),)

        out = pl.pallas_call(
            _ffm_kernel,
            out_shape=jax.ShapeDtypeStruct((bp_pad, fdim), odt),
            grid=grid,
            in_specs=[
                pl.BlockSpec((tb, K), lambda i: (i, 0)),
                pl.BlockSpec((K, fdim), lambda i: (0, 0)),
            ],
            out_specs=pl.BlockSpec((tb, fdim), lambda i: (i, 0)),
            compiler_params=pltpu.CompilerParams(
                dimension_semantics=("parallel",),
                vmem_limit_bytes=32 * 1024 * 1024),
            cost_estimate=pl.CostEstimate(
                flops=2 * bp_pad * K * fdim,
                transcendentals=bp_pad * fdim,
                bytes_accessed=4 * bp_pad * K + 4 * K * fdim
                               + out_itemsize * bp_pad * fdim),
        )(x_aug, mat)

        # Undo the packing / padding (row-major reshape is free; pads are usually 0-width).
        return out[:bp].reshape(b1, two_ln)[:B]

    return forward, ffm


def reference_basic_ffm(x, ffm, L):
    """Pure-JAX replica of the PyTorch forward (explicit sin/cos, %4 strided pattern)."""
    rep = jnp.tile(x.astype(jnp.float32), (1, 2 * L)) * ffm
    col = jnp.arange(rep.shape[1]) % 4
    out = jnp.where((col < 2)[None, :], jnp.sin(rep), jnp.cos(rep))
    return out.astype(x.dtype)


if __name__ == "__main__":
    key = jax.random.PRNGKey(0)

    # Case 1: linear mode at the module's implied small shape (batch=2, numInput=4, L=8).
    L, num_input, batch = 8, 4, 2
    x = jax.random.normal(key, (batch, num_input), dtype=jnp.float32)
    fwd_lin, ffm_lin = make_basic_ffm("linear", L, num_input)
    out_lin = jax.block_until_ready(fwd_lin(x))
    ref_lin = reference_basic_ffm(x, ffm_lin, L)
    assert out_lin.shape == (batch, 2 * L * num_input), out_lin.shape
    assert jnp.allclose(out_lin, ref_lin, atol=1e-4, rtol=1e-4), "linear mismatch"

    # Case 2: loglinear mode (larger |arguments| -> slightly looser tolerance for the
    # cos(t)==sin(t+pi/2) fold and f32 range reduction).
    fwd_ll, ffm_ll = make_basic_ffm("loglinear", L, num_input)
    out_ll = jax.block_until_ready(fwd_ll(x))
    ref_ll = reference_basic_ffm(x, ffm_ll, L)
    assert jnp.allclose(out_ll, ref_ll, atol=5e-3, rtol=1e-3), "loglinear mismatch"

    # Case 3: exercises the batch-padding path (B not a multiple of the lane-packing
    # factor) and a multi-step pipelined grid (>= 2 tiles).
    L2, n2, b2 = 4, 3, 250
    x2 = jax.random.normal(jax.random.PRNGKey(0), (b2, n2), dtype=jnp.float32)
    fwd2, ffm2 = make_basic_ffm("linear", L2, n2)
    out2 = jax.block_until_ready(fwd2(x2))
    ref2 = reference_basic_ffm(x2, ffm2, L2)
    assert out2.shape == (b2, 2 * L2 * n2), out2.shape
    assert jnp.allclose(out2, ref2, atol=1e-4, rtol=1e-4), "padded/packed mismatch"

    print("KERNEL_OK")
</pallas_src>

<mosaic_0001>
module attributes {stable_mosaic.version = 11 : i64} {
  func.func @_ffm_kernel(%arg0: i32, %arg1: memref<8x16xf32, #tpu.memory_space<vmem>>, %arg2: memref<16x128xf32, #tpu.memory_space<vmem>>, %arg3: memref<8x128xf32, #tpu.memory_space<vmem>>) attributes {dimension_semantics = [#tpu.dimension_semantics<parallel>], iteration_bounds = array<i64: 1>, scalar_prefetch = 0 : i64, scratch_operands = 0 : i64, tpu.core_type = #tpu.core_type<tc>, window_params = [{transform_indices = @transform_0, window_bounds = array<i64: 8, 16>}, {pipeline_mode = #tpu.pipeline_mode<synchronous>, transform_indices = @transform_1, window_bounds = array<i64: 16, 128>}, {transform_indices = @transform_2, window_bounds = array<i64: 8, 128>}]} {
    %c0 = arith.constant 0 : index
    %c0_0 = arith.constant 0 : index
    %0 = vector.load %arg1[%c0, %c0_0] : memref<8x16xf32, #tpu.memory_space<vmem>>, vector<8x16xf32>
    %c0_1 = arith.constant 0 : index
    %c0_2 = arith.constant 0 : index
    %1 = vector.load %arg2[%c0_1, %c0_2] : memref<16x128xf32, #tpu.memory_space<vmem>>, vector<16x128xf32>
    %cst = arith.constant dense<0.000000e+00> : vector<8x128xf32>
    %2 = tpu.matmul %0, %1, %cst {dimension_numbers = #tpu.dot_dimension_numbers<[1], [0], [0], [1], [0, 0, 1, 1], [], []>, precision = #tpu.contract_precision<fp32>} : vector<8x16xf32>, vector<16x128xf32>, vector<8x128xf32> -> vector<8x128xf32>
    %3 = math.sin %2 : vector<8x128xf32>
    %c0_3 = arith.constant 0 : index
    %c0_4 = arith.constant 0 : index
    %4 = vector.load %arg3[%c0_3, %c0_4] : memref<8x128xf32, #tpu.memory_space<vmem>>, vector<8x128xf32>
    tpu.vector_store %arg3[%c0_3, %c0_4], %3 {strides = array<i32>} : memref<8x128xf32, #tpu.memory_space<vmem>>, vector<8x128xf32>,
    return
  }
  func.func @transform_0(%arg0: i32) -> (i32, i32) {
    %c0_i32 = arith.constant 0 : i32
    %c0_i32_0 = arith.constant 0 : i32
    return %arg0, %c0_i32 : i32, i32
  }
  func.func @transform_1(%arg0: i32) -> (i32, i32) {
    %c0_i32 = arith.constant 0 : i32
    %c0_i32_0 = arith.constant 0 : i32
    %c0_i32_1 = arith.constant 0 : i32
    return %c0_i32, %c0_i32_0 : i32, i32
  }
  func.func @transform_2(%arg0: i32) -> (i32, i32) {
    %c0_i32 = arith.constant 0 : i32
    %c0_i32_0 = arith.constant 0 : i32
    return %arg0, %c0_i32 : i32, i32
  }
}

</mosaic_0001>

<llo_original>
// kernel: tpu_custom_call.1
$region0: #{tpu_custom_call.1}
  #allocation0 [shape = 'u32[]', space=smem, size = 0x4, offset = 0x4, fixed_abs, tag = 'smem constant byte address 0x4 - core index']
  #allocation1 [shape = 'u32[144,128]{1,0:T(1,128)}', space=vmem, size = 0x12000, scoped, tag = 'internal scratch']
  %s0 = inlined_call_operand.hbm [shape: f32[8,16], index: 0, kind: input, shape index: {}]
  %s1 = inlined_call_operand.hbm [shape: f32[16,128], index: 1, kind: input, shape index: {}]
  %s2 = inlined_call_operand.hbm [shape: f32[8,128], index: 2, kind: output, shape index: {}]
  %s3 = sld [smem:[#allocation0]]
  $region26: #{tpu_custom_call.1} parent=0
    _
  %s5 = ssub.s32 1, %s3
  %s6 = scalar_select 0, %s5, %s3
  $region1: #{tpu_custom_call.1} parent=0
    #allocation2 [shape = 'u8[4096]{0}', space=vmem, size = 0x1000, scoped, tag = 'input window, operand 0, single buffered']
    #allocation3 [shape = 's32[1]{0}', space=sflag, size = 0x4, scoped, tag = 'scoped memory for tpu_custom_call.1']
    #allocation4 [shape = 's32[1]{0}', space=sflag, size = 0x4, scoped, tag = 'scoped memory for tpu_custom_call.1']
    #allocation5 [shape = 'u8[8192]{0}', space=vmem, size = 0x2000, scoped, tag = 'input window, operand 1, single buffered']
    #allocation6 [shape = 's32[1]{0}', space=sflag, size = 0x4, scoped, tag = 'scoped memory for tpu_custom_call.1']
    #allocation7 [shape = 'u8[4096]{0}', space=vmem, size = 0x1000, scoped, tag = 'output window, operand 0, single buffered']
    %7 = vsyncpa [#allocation3], 0
    %8 = vsyncpa [#allocation6], 0
    %9 = vsyncpa [#allocation4], 0
    // Predicated region
    $region2: #{tpu_custom_call.1} parent=1 // pred_check
      _
    $region3: #{tpu_custom_call.1} parent=1 // pred_check_branch
      %11 = sbr.rel (0) target = $region5
    $region4: #{tpu_custom_call.1} parent=1 // pred_region
      %s13 = ssub.s32 128, 128
      %14 = vsyncadd [#allocation3], %s13
      %s16 = sshll.u32 [#allocation2], 4
      %s17 = int_to_ptr.vmem [resolvable:$true] %s16
      %19 = dma.hbm_to_vmem [thread:$0]  %s0, 128, %s17, [#allocation3]
    $region5: #{tpu_custom_call.1} parent=1 // pred_fallthru
      _
    // Predicated region
    $region6: #{tpu_custom_call.1} parent=1 // pred_check
      _
    $region7: #{tpu_custom_call.1} parent=1 // pred_check_branch
      %21 = sbr.rel (0) target = $region9
    $region8: #{tpu_custom_call.1} parent=1 // pred_region
      %s23 = ssub.s32 256, 256
      %24 = vsyncadd [#allocation6], %s23
      %s25 = sshll.u32 [#allocation5], 4
      %s26 = int_to_ptr.vmem [resolvable:$true] %s25
      %31 = dma.hbm_to_vmem [thread:$0]  %s1, 256, %s26, [#allocation6], 128, 128, 8
    $region9: #{tpu_custom_call.1} parent=1 // pred_fallthru
      _
    // Predicated region
    $region10: #{tpu_custom_call.1} parent=1 // pred_check
      _
    $region11: #{tpu_custom_call.1} parent=1 // pred_check_branch
      %33 = sbr.rel (0) target = $region13
    $region12: #{tpu_custom_call.1} parent=1 // pred_region
      %34 = dma.done [#allocation3], 128
    $region13: #{tpu_custom_call.1} parent=1 // pred_fallthru
      _
    // Predicated region
    $region14: #{tpu_custom_call.1} parent=1 // pred_check
      _
    $region15: #{tpu_custom_call.1} parent=1 // pred_check_branch
      %36 = sbr.rel (0) target = $region17
    $region16: #{tpu_custom_call.1} parent=1 // pred_region
      %37 = dma.done [#allocation6], 256
    $region17: #{tpu_custom_call.1} parent=1 // pred_fallthru
      _
    %v38 = vld [vmem:[#allocation2] sm:$0xff]
    %v39 = vld [vmem:[#allocation5] sm:$0xff]
    %v40 = vld [vmem:[#allocation5 + $0x8] sm:$0xff]
    %vm41 = vcmask 130048
    %v43 = vsel %vm41, %v38, 0
    %45 = vmatprep.subr.mxu0 0.0
    %v46 = vand.u32 %v39, 4294901760
    %47 = vmatpush1.msra.mxu0 %v46
    %48 = vmatprep.subr.mxu0 0.0
    %v49 = vand.u32 %v40, 4294901760
    %50 = vmatpush1.msra.mxu0 %v49
    %51 = vmatprep.subr.mxu0 0.0
    %52 = vmatpush1.msra.mxu0 0.0
    %53 = vmatprep.subr.mxu0 0.0
    %54 = vmatpush1.msra.mxu0 0.0
    %55 = vmatprep.subr.mxu0 0.0
    %56 = vmatpush1.msra.mxu0 0.0
    %57 = vmatprep.subr.mxu0 0.0
    %58 = vmatpush1.msra.mxu0 0.0
    %59 = vmatprep.subr.mxu0 0.0
    %60 = vmatpush1.msra.mxu0 0.0
    %61 = vmatprep.subr.mxu0 0.0
    %62 = vmatpush1.msra.mxu0 0.0
    %63 = vmatprep.subr.mxu0 0.0
    %64 = vmatpush1.msra.mxu0 0.0
    %65 = vmatprep.subr.mxu0 0.0
    %66 = vmatpush1.msra.mxu0 0.0
    %67 = vmatprep.subr.mxu0 0.0
    %68 = vmatpush1.msra.mxu0 0.0
    %69 = vmatprep.subr.mxu0 0.0
    %70 = vmatpush1.msra.mxu0 0.0
    %71 = vmatprep.subr.mxu0 0.0
    %72 = vmatpush1.msra.mxu0 0.0
    %73 = vmatprep.subr.mxu0 0.0
    %74 = vmatpush1.msra.mxu0 0.0
    %75 = vmatprep.subr.mxu0 0.0
    %76 = vmatpush1.msra.mxu0 0.0
    %77 = vmatprep.subr.mxu0 0.0
    %78 = vmatpush1.msra.mxu0 0.0
    %79 = vmatprep.subr.mxu0 0.0
    %80 = vmatpush1.msra.mxu0 0.0
    %81 = vmatprep.subr.mxu0 0.0
    %82 = vmatpush1.msra.mxu0 0.0
    %83 = vmatprep.subr.mxu0 0.0
    %84 = vmatpush1.msra.mxu0 0.0
    %85 = vmatprep.subr.mxu0 0.0
    %86 = vmatpush1.msra.mxu0 0.0
    %87 = vmatprep.subr.mxu0 0.0
    %88 = vmatpush1.msra.mxu0 0.0
    %89 = vmatprep.subr.mxu0 0.0
    %90 = vmatpush1.msra.mxu0 0.0
    %91 = vmatprep.subr.mxu0 0.0
    %92 = vmatpush1.msra.mxu0 0.0
    %93 = vmatprep.subr.mxu0 0.0
    %94 = vmatpush1.msra.mxu0 0.0
    %95 = vmatprep.subr.mxu0 0.0
    %96 = vmatpush1.msra.mxu0 0.0
    %97 = vmatprep.subr.mxu0 0.0
    %98 = vmatpush1.msra.mxu0 0.0
    %99 = vmatprep.subr.mxu0 0.0
    %100 = vmatpush1.msra.mxu0 0.0
    %101 = vmatprep.subr.mxu0 0.0
    %102 = vmatpush1.msra.mxu0 0.0
    %103 = vmatprep.subr.mxu0 0.0
    %104 = vmatpush1.msra.mxu0 0.0
    %105 = vmatprep.subr.mxu0 0.0
    %106 = vmatpush1.msra.mxu0 0.0
    %107 = vmatprep.subr.mxu0 0.0
    %108 = vmatpush1.msra.mxu0 0.0
    %109 = vmatprep.subr.mxu0 0.0
    %110 = vmatpush1.msra.mxu0 0.0
    %111 = vmatprep.mubr.f32.mxu0 0.0
    %v112 = vand.u32 %v43, 4294901760
    %v113 = vsub.f32 %v43, %v112
    %v114 = vand.u32 %v113, 4294901760
    %v115 = vsub.f32 %v113, %v114
    %v116 = vand.u32 %v115, 4294901760
    %117 = vmatmul.mubr.f32.gmra.mrb[0].mxu0 %v116
    %v118 = vpop.f32.mrb[0].mxu0
    %v119 = vadd.f32 0.0, %v118
    %v120 = vpop.f32.mrb[0].mxu0
    %121 = vdwg.mxu0
    %122 = vmatprep.subr.mxu0 0.0
    %v123 = vand.u32 %v39, 4294901760
    %v124 = vsub.f32 %v39, %v123
    %v125 = vand.u32 %v124, 4294901760
    %v126 = vsub.f32 %v124, %v125
    %v127 = vand.u32 %v126, 4294901760
    %128 = vmatpush1.msra.mxu0 %v127
    %129 = vmatprep.subr.mxu0 0.0
    %v130 = vand.u32 %v40, 4294901760
    %v131 = vsub.f32 %v40, %v130
    %v132 = vand.u32 %v131, 4294901760
    %v133 = vsub.f32 %v131, %v132
    %v134 = vand.u32 %v133, 4294901760
    %135 = vmatpush1.msra.mxu0 %v134
    %136 = vmatprep.subr.mxu0 0.0
    %137 = vmatpush1.msra.mxu0 0.0
    %138 = vmatprep.subr.mxu0 0.0
    %139 = vmatpush1.msra.mxu0 0.0
    %140 = vmatprep.subr.mxu0 0.0
    %141 = vmatpush1.msra.mxu0 0.0
    %142 = vmatprep.subr.mxu0 0.0
    %143 = vmatpush1.msra.mxu0 0.0
    %144 = vmatprep.subr.mxu0 0.0
    %145 = vmatpush1.msra.mxu0 0.0
    %146 = vmatprep.subr.mxu0 0.0
    %147 = vmatpush1.msra.mxu0 0.0
    %148 = vmatprep.subr.mxu0 0.0
    %149 = vmatpush1.msra.mxu0 0.0
    %150 = vmatprep.subr.mxu0 0.0
    %151 = vmatpush1.msra.mxu0 0.0
    %152 = vmatprep.subr.mxu0 0.0
    %153 = vmatpush1.msra.mxu0 0.0
    %154 = vmatprep.subr.mxu0 0.0
    %155 = vmatpush1.msra.mxu0 0.0
    %156 = vmatprep.subr.mxu0 0.0
    %157 = vmatpush1.msra.mxu0 0.0
    %158 = vmatprep.subr.mxu0 0.0
    %159 = vmatpush1.msra.mxu0 0.0
    %160 = vmatprep.subr.mxu0 0.0
    %161 = vmatpush1.msra.mxu0 0.0
    %162 = vmatprep.subr.mxu0 0.0
    %163 = vmatpush1.msra.mxu0 0.0
    %164 = vmatprep.subr.mxu0 0.0
    %165 = vmatpush1.msra.mxu0 0.0
    %166 = vmatprep.subr.mxu0 0.0
    %167 = vmatpush1.msra.mxu0 0.0
    %168 = vmatprep.subr.mxu0 0.0
    %169 = vmatpush1.msra.mxu0 0.0
    %170 = vmatprep.subr.mxu0 0.0
    %171 = vmatpush1.msra.mxu0 0.0
    %172 = vmatprep.subr.mxu0 0.0
    %173 = vmatpush1.msra.mxu0 0.0
    %174 = vmatprep.subr.mxu0 0.0
    %175 = vmatpush1.msra.mxu0 0.0
    %176 = vmatprep.subr.mxu0 0.0
    %177 = vmatpush1.msra.mxu0 0.0
    %178 = vmatprep.subr.mxu0 0.0
    %179 = vmatpush1.msra.mxu0 0.0
    %180 = vmatprep.subr.mxu0 0.0
    %181 = vmatpush1.msra.mxu0 0.0
    %182 = vmatprep.subr.mxu0 0.0
    %183 = vmatpush1.msra.mxu0 0.0
    %184 = vmatprep.subr.mxu0 0.0
    %185 = vmatpush1.msra.mxu0 0.0
    %186 = vmatprep.subr.mxu0 0.0
    %187 = vmatpush1.msra.mxu0 0.0
    %188 = vmatprep.subr.mxu0 0.0
    %189 = vmatpush1.msra.mxu0 0.0
    %190 = vmatprep.subr.mxu0 0.0
    %191 = vmatpush1.msra.mxu0 0.0
    %192 = vmatprep.subr.mxu0 0.0
    %193 = vmatpush1.msra.mxu0 0.0
    %194 = vmatprep.subr.mxu0 0.0
    %195 = vmatpush1.msra.mxu0 0.0
    %196 = vmatprep.mubr.f32.mxu0 0.0
    %v197 = vand.u32 %v43, 4294901760
    %198 = vmatmul.mubr.f32.gmra.mrb[0].mxu0 %v197
    %v199 = vpop.f32.mrb[0].mxu0
    %v200 = vadd.f32 %v119, %v199
    %v201 = vpop.f32.mrb[0].mxu0
    %202 = vdwg.mxu0
    %203 = vmatprep.subr.mxu0 0.0
    %v204 = vand.u32 %v39, 4294901760
    %v205 = vsub.f32 %v39, %v204
    %206 = vmatpush1.msra.mxu0 %v205
    %207 = vmatprep.subr.mxu0 0.0
    %v208 = vand.u32 %v40, 4294901760
    %v209 = vsub.f32 %v40, %v208
    %210 = vmatpush1.msra.mxu0 %v209
    %211 = vmatprep.subr.mxu0 0.0
    %212 = vmatpush1.msra.mxu0 0.0
    %213 = vmatprep.subr.mxu0 0.0
    %214 = vmatpush1.msra.mxu0 0.0
    %215 = vmatprep.subr.mxu0 0.0
    %216 = vmatpush1.msra.mxu0 0.0
    %217 = vmatprep.subr.mxu0 0.0
    %218 = vmatpush1.msra.mxu0 0.0
    %219 = vmatprep.subr.mxu0 0.0
    %220 = vmatpush1.msra.mxu0 0.0
    %221 = vmatprep.subr.mxu0 0.0
    %222 = vmatpush1.msra.mxu0 0.0
    %223 = vmatprep.subr.mxu0 0.0
    %224 = vmatpush1.msra.mxu0 0.0
    %225 = vmatprep.subr.mxu0 0.0
    %226 = vmatpush1.msra.mxu0 0.0
    %227 = vmatprep.subr.mxu0 0.0
    %228 = vmatpush1.msra.mxu0 0.0
    %229 = vmatprep.subr.mxu0 0.0
    %230 = vmatpush1.msra.mxu0 0.0
    %231 = vmatprep.subr.mxu0 0.0
    %232 = vmatpush1.msra.mxu0 0.0
    %233 = vmatprep.subr.mxu0 0.0
    %234 = vmatpush1.msra.mxu0 0.0
    %235 = vmatprep.subr.mxu0 0.0
    %236 = vmatpush1.msra.mxu0 0.0
    %237 = vmatprep.subr.mxu0 0.0
    %238 = vmatpush1.msra.mxu0 0.0
    %239 = vmatprep.subr.mxu0 0.0
    %240 = vmatpush1.msra.mxu0 0.0
    %241 = vmatprep.subr.mxu0 0.0
    %242 = vmatpush1.msra.mxu0 0.0
    %243 = vmatprep.subr.mxu0 0.0
    %244 = vmatpush1.msra.mxu0 0.0
    %245 = vmatprep.subr.mxu0 0.0
    %246 = vmatpush1.msra.mxu0 0.0
    %247 = vmatprep.subr.mxu0 0.0
    %248 = vmatpush1.msra.mxu0 0.0
    %249 = vmatprep.subr.mxu0 0.0
    %250 = vmatpush1.msra.mxu0 0.0
    %251 = vmatprep.subr.mxu0 0.0
    %252 = vmatpush1.msra.mxu0 0.0
    %253 = vmatprep.subr.mxu0 0.0
    %254 = vmatpush1.msra.mxu0 0.0
    %255 = vmatprep.subr.mxu0 0.0
    %256 = vmatpush1.msra.mxu0 0.0
    %257 = vmatprep.subr.mxu0 0.0
    %258 = vmatpush1.msra.mxu0 0.0
    %259 = vmatprep.subr.mxu0 0.0
    %260 = vmatpush1.msra.mxu0 0.0
    %261 = vmatprep.subr.mxu0 0.0
    %262 = vmatpush1.msra.mxu0 0.0
    %263 = vmatprep.subr.mxu0 0.0
    %264 = vmatpush1.msra.mxu0 0.0
    %265 = vmatprep.subr.mxu0 0.0
    %266 = vmatpush1.msra.mxu0 0.0
    %267 = vmatprep.subr.mxu0 0.0
    %268 = vmatpush1.msra.mxu0 0.0
    %269 = vmatprep.subr.mxu0 0.0
    %270 = vmatpush1.msra.mxu0 0.0
    %271 = vmatprep.mubr.f32.mxu0 0.0
    %v272 = vand.u32 %v43, 4294901760
    %v273 = vsub.f32 %v43, %v272
    %274 = vmatmul.mubr.f32.gmra.mrb[0].mxu0 %v273
    %v275 = vpop.f32.mrb[0].mxu0
    %v276 = vadd.f32 %v200, %v275
    %v277 = vpop.f32.mrb[0].mxu0
    %278 = vdwg.mxu0
    %279 = vmatprep.subr.mxu0 0.0
    %v280 = vand.u32 %v39, 4294901760
    %281 = vmatpush1.msra.mxu0 %v280
    %282 = vmatprep.subr.mxu0 0.0
    %v283 = vand.u32 %v40, 4294901760
    %284 = vmatpush1.msra.mxu0 %v283
    %285 = vmatprep.subr.mxu0 0.0
    %286 = vmatpush1.msra.mxu0 0.0
    %287 = vmatprep.subr.mxu0 0.0
    %288 = vmatpush1.msra.mxu0 0.0
    %289 = vmatprep.subr.mxu0 0.0
    %290 = vmatpush1.msra.mxu0 0.0
    %291 = vmatprep.subr.mxu0 0.0
    %292 = vmatpush1.msra.mxu0 0.0
    %293 = vmatprep.subr.mxu0 0.0
    %294 = vmatpush1.msra.mxu0 0.0
    %295 = vmatprep.subr.mxu0 0.0
    %296 = vmatpush1.msra.mxu0 0.0
    %297 = vmatprep.subr.mxu0 0.0
    %298 = vmatpush1.msra.mxu0 0.0
    %299 = vmatprep.subr.mxu0 0.0
    %300 = vmatpush1.msra.mxu0 0.0
    %301 = vmatprep.subr.mxu0 0.0
    %302 = vmatpush1.msra.mxu0 0.0
    %303 = vmatprep.subr.mxu0 0.0
    %304 = vmatpush1.msra.mxu0 0.0
    %305 = vmatprep.subr.mxu0 0.0
    %306 = vmatpush1.msra.mxu0 0.0
    %307 = vmatprep.subr.mxu0 0.0
    %308 = vmatpush1.msra.mxu0 0.0
    %309 = vmatprep.subr.mxu0 0.0
    %310 = vmatpush1.msra.mxu0 0.0
    %311 = vmatprep.subr.mxu0 0.0
    %312 = vmatpush1.msra.mxu0 0.0
    %313 = vmatprep.subr.mxu0 0.0
    %314 = vmatpush1.msra.mxu0 0.0
    %315 = vmatprep.subr.mxu0 0.0
    %316 = vmatpush1.msra.mxu0 0.0
    %317 = vmatprep.subr.mxu0 0.0
    %318 = vmatpush1.msra.mxu0 0.0
    %319 = vmatprep.subr.mxu0 0.0
    %320 = vmatpush1.msra.mxu0 0.0
    %321 = vmatprep.subr.mxu0 0.0
    %322 = vmatpush1.msra.mxu0 0.0
    %323 = vmatprep.subr.mxu0 0.0
    %324 = vmatpush1.msra.mxu0 0.0
    %325 = vmatprep.subr.mxu0 0.0
    %326 = vmatpush1.msra.mxu0 0.0
    %327 = vmatprep.subr.mxu0 0.0
    %328 = vmatpush1.msra.mxu0 0.0
    %329 = vmatprep.subr.mxu0 0.0
    %330 = vmatpush1.msra.mxu0 0.0
    %331 = vmatprep.subr.mxu0 0.0
    %332 = vmatpush1.msra.mxu0 0.0
    %333 = vmatprep.subr.mxu0 0.0
    %334 = vmatpush1.msra.mxu0 0.0
    %335 = vmatprep.subr.mxu0 0.0
    %336 = vmatpush1.msra.mxu0 0.0
    %337 = vmatprep.subr.mxu0 0.0
    %338 = vmatpush1.msra.mxu0 0.0
    %339 = vmatprep.subr.mxu0 0.0
    %340 = vmatpush1.msra.mxu0 0.0
    %341 = vmatprep.subr.mxu0 0.0
    %342 = vmatpush1.msra.mxu0 0.0
    %343 = vmatprep.subr.mxu0 0.0
    %344 = vmatpush1.msra.mxu0 0.0
    %345 = vmatprep.mubr.f32.mxu0 0.0
    %v346 = vand.u32 %v43, 4294901760
    %v347 = vsub.f32 %v43, %v346
    %v348 = vand.u32 %v347, 4294901760
    %349 = vmatmul.mubr.f32.gmra.mrb[0].mxu0 %v348
    %v350 = vpop.f32.mrb[0].mxu0
    %v351 = vadd.f32 %v276, %v350
    %v352 = vpop.f32.mrb[0].mxu0
    %353 = vdwg.mxu0
    %354 = vmatprep.subr.mxu0 0.0
    %v355 = vand.u32 %v39, 4294901760
    %v356 = vsub.f32 %v39, %v355
    %v357 = vand.u32 %v356, 4294901760
    %358 = vmatpush1.msra.mxu0 %v357
    %359 = vmatprep.subr.mxu0 0.0
    %v360 = vand.u32 %v40, 4294901760
    %v361 = vsub.f32 %v40, %v360
    %v362 = vand.u32 %v361, 4294901760
    %363 = vmatpush1.msra.mxu0 %v362
    %364 = vmatprep.subr.mxu0 0.0
    %365 = vmatpush1.msra.mxu0 0.0
    %366 = vmatprep.subr.mxu0 0.0
    %367 = vmatpush1.msra.mxu0 0.0
    %368 = vmatprep.subr.mxu0 0.0
    %369 = vmatpush1.msra.mxu0 0.0
    %370 = vmatprep.subr.mxu0 0.0
    %371 = vmatpush1.msra.mxu0 0.0
    %372 = vmatprep.subr.mxu0 0.0
    %373 = vmatpush1.msra.mxu0 0.0
    %374 = vmatprep.subr.mxu0 0.0
    %375 = vmatpush1.msra.mxu0 0.0
    %376 = vmatprep.subr.mxu0 0.0
    %377 = vmatpush1.msra.mxu0 0.0
    %378 = vmatprep.subr.mxu0 0.0
    %379 = vmatpush1.msra.mxu0 0.0
    %380 = vmatprep.subr.mxu0 0.0
    %381 = vmatpush1.msra.mxu0 0.0
    %382 = vmatprep.subr.mxu0 0.0
    %383 = vmatpush1.msra.mxu0 0.0
    %384 = vmatprep.subr.mxu0 0.0
    %385 = vmatpush1.msra.mxu0 0.0
    %386 = vmatprep.subr.mxu0 0.0
    %387 = vmatpush1.msra.mxu0 0.0
    %388 = vmatprep.subr.mxu0 0.0
    %389 = vmatpush1.msra.mxu0 0.0
    %390 = vmatprep.subr.mxu0 0.0
    %391 = vmatpush1.msra.mxu0 0.0
    %392 = vmatprep.subr.mxu0 0.0
    %393 = vmatpush1.msra.mxu0 0.0
    %394 = vmatprep.subr.mxu0 0.0
    %395 = vmatpush1.msra.mxu0 0.0
    %396 = vmatprep.subr.mxu0 0.0
    %397 = vmatpush1.msra.mxu0 0.0
    %398 = vmatprep.subr.mxu0 0.0
    %399 = vmatpush1.msra.mxu0 0.0
    %400 = vmatprep.subr.mxu0 0.0
    %401 = vmatpush1.msra.mxu0 0.0
    %402 = vmatprep.subr.mxu0 0.0
    %403 = vmatpush1.msra.mxu0 0.0
    %404 = vmatprep.subr.mxu0 0.0
    %405 = vmatpush1.msra.mxu0 0.0
    %406 = vmatprep.subr.mxu0 0.0
    %407 = vmatpush1.msra.mxu0 0.0
    %408 = vmatprep.subr.mxu0 0.0
    %409 = vmatpush1.msra.mxu0 0.0
    %410 = vmatprep.subr.mxu0 0.0
    %411 = vmatpush1.msra.mxu0 0.0
    %412 = vmatprep.subr.mxu0 0.0
    %413 = vmatpush1.msra.mxu0 0.0
    %414 = vmatprep.subr.mxu0 0.0
    %415 = vmatpush1.msra.mxu0 0.0
    %416 = vmatprep.subr.mxu0 0.0
    %417 = vmatpush1.msra.mxu0 0.0
    %418 = vmatprep.subr.mxu0 0.0
    %419 = vmatpush1.msra.mxu0 0.0
    %420 = vmatprep.subr.mxu0 0.0
    %421 = vmatpush1.msra.mxu0 0.0
    %422 = vmatprep.subr.mxu0 0.0
    %423 = vmatpush1.msra.mxu0 0.0
    %424 = vmatprep.mubr.f32.mxu0 0.0
    %v425 = vand.u32 %v43, 4294901760
    %426 = vmatmul.mubr.f32.gmra.mrb[0].mxu0 %v425
    %v427 = vpop.f32.mrb[0].mxu0
    %v428 = vadd.f32 %v351, %v427
    %v429 = vpop.f32.mrb[0].mxu0
    %430 = vdwg.mxu0
    %431 = vmatprep.subr.mxu0 0.0
    %v432 = vand.u32 %v39, 4294901760
    %433 = vmatpush1.msra.mxu0 %v432
    %434 = vmatprep.subr.mxu0 0.0
    %v435 = vand.u32 %v40, 4294901760
    %436 = vmatpush1.msra.mxu0 %v435
    %437 = vmatprep.subr.mxu0 0.0
    %438 = vmatpush1.msra.mxu0 0.0
    %439 = vmatprep.subr.mxu0 0.0
    %440 = vmatpush1.msra.mxu0 0.0
    %441 = vmatprep.subr.mxu0 0.0
    %442 = vmatpush1.msra.mxu0 0.0
    %443 = vmatprep.subr.mxu0 0.0
    %444 = vmatpush1.msra.mxu0 0.0
    %445 = vmatprep.subr.mxu0 0.0
    %446 = vmatpush1.msra.mxu0 0.0
    %447 = vmatprep.subr.mxu0 0.0
    %448 = vmatpush1.msra.mxu0 0.0
    %449 = vmatprep.subr.mxu0 0.0
    %450 = vmatpush1.msra.mxu0 0.0
    %451 = vmatprep.subr.mxu0 0.0
    %452 = vmatpush1.msra.mxu0 0.0
    %453 = vmatprep.subr.mxu0 0.0
    %454 = vmatpush1.msra.mxu0 0.0
    %455 = vmatprep.subr.mxu0 0.0
    %456 = vmatpush1.msra.mxu0 0.0
    %457 = vmatprep.subr.mxu0 0.0
    %458 = vmatpush1.msra.mxu0 0.0
    %459 = vmatprep.subr.mxu0 0.0
    %460 = vmatpush1.msra.mxu0 0.0
    %461 = vmatprep.subr.mxu0 0.0
    %462 = vmatpush1.msra.mxu0 0.0
    %463 = vmatprep.subr.mxu0 0.0
    %464 = vmatpush1.msra.mxu0 0.0
    %465 = vmatprep.subr.mxu0 0.0
    %466 = vmatpush1.msra.mxu0 0.0
    %467 = vmatprep.subr.mxu0 0.0
    %468 = vmatpush1.msra.mxu0 0.0
    %469 = vmatprep.subr.mxu0 0.0
    %470 = vmatpush1.msra.mxu0 0.0
    %471 = vmatprep.subr.mxu0 0.0
    %472 = vmatpush1.msra.mxu0 0.0
    %473 = vmatprep.subr.mxu0 0.0
    %474 = vmatpush1.msra.mxu0 0.0
    %475 = vmatprep.subr.mxu0 0.0
    %476 = vmatpush1.msra.mxu0 0.0
    %477 = vmatprep.subr.mxu0 0.0
    %478 = vmatpush1.msra.mxu0 0.0
    %479 = vmatprep.subr.mxu0 0.0
    %480 = vmatpush1.msra.mxu0 0.0
    %481 = vmatprep.subr.mxu0 0.0
    %482 = vmatpush1.msra.mxu0 0.0
    %483 = vmatprep.subr.mxu0 0.0
    %484 = vmatpush1.msra.mxu0 0.0
    %485 = vmatprep.subr.mxu0 0.0
    %486 = vmatpush1.msra.mxu0 0.0
    %487 = vmatprep.subr.mxu0 0.0
    %488 = vmatpush1.msra.mxu0 0.0
    %489 = vmatprep.subr.mxu0 0.0
    %490 = vmatpush1.msra.mxu0 0.0
    %491 = vmatprep.subr.mxu0 0.0
    %492 = vmatpush1.msra.mxu0 0.0
    %493 = vmatprep.subr.mxu0 0.0
    %494 = vmatpush1.msra.mxu0 0.0
    %495 = vmatprep.subr.mxu0 0.0
    %496 = vmatpush1.msra.mxu0 0.0
    %497 = vmatprep.mubr.f32.mxu0 0.0
    %v498 = vand.u32 %v43, 4294901760
    %499 = vmatmul.mubr.f32.gmra.mrb[0].mxu0 %v498
    %v500 = vpop.f32.mrb[0].mxu0
    %v501 = vadd.f32 %v428, %v500
    %v502 = vpop.f32.mrb[0].mxu0
    %503 = vdwg.mxu0
    %v504 = vand.u32 2147483647, %v501
    %vm505 = vcmp.le.f32.partialorder %v504, 0.7853982
    %vm506 = vcmp.lt.s32.totalorder %v501, 0
    %v507 = vand.u32 %v501, 2139095040
    %v508 = vshrl.u32 %v507, 23
    %v509 = vsub.s32 %v508, 127
    %v510 = vand.u32 2147483647, %v501
    %v511 = vand.u32 %v510, 8388607
    %v512 = vor.u32 %v511, 8388608
    %v513 = vsub.s32 0, %v512
    %v514 = vadd.s32 %v509, 1
    %vm515 = vcmp.gt.s32.totalorder %v514, 0
    %v516 = vsel %vm515, %v514, 0
    %v517 = vshrl.u32 %v516, 5
    %v518 = vand.u32 %v516, 31
    %v519 = vsub.s32 32, %v518
    %v520 = vshrl.u32 683565275, %v519
    %v521 = vshll.u32 683565275, %v518
    %v522 = vshrl.u32 2475754826, %v519
    %v523 = vor.u32 %v521, %v522
    %v524 = vshll.u32 2475754826, %v518
    %v525 = vshrl.u32 2131351028, %v519
    %v526 = vor.u32 %v524, %v525
    %v527 = vshll.u32 2131351028, %v518
    %v528 = vshrl.u32 2102212464, %v519
    %v529 = vor.u32 %v527, %v528
    %v530 = vshll.u32 2102212464, %v518
    %v531 = vshrl.u32 920167782, %v519
    %v532 = vor.u32 %v530, %v531
    %v533 = vshll.u32 920167782, %v518
    %v534 = vshrl.u32 1326507024, %v519
    %v535 = vor.u32 %v533, %v534
    %vm536 = vcmp.lt.s32.totalorder %v517, 1
    %vm537 = vcmp.lt.s32.totalorder %v517, 2
    %vm538 = vcmp.lt.s32.totalorder %v517, 3
    %vm539 = vcmp.lt.s32.totalorder %v517, 4
    %v540 = vsel %vm536, %v520, %v523
    %v541 = vsel %vm539, %v529, 2102212464
    %v542 = vsel %vm538, %v526, %v541
    %v543 = vsel %vm537, %v540, %v542
    %v544 = vsel %vm536, %v523, %v526
    %v545 = vsel %vm539, %v532, 920167782
    %v546 = vsel %vm538, %v529, %v545
    %v547 = vsel %vm537, %v544, %v546
    %v548 = vsel %vm536, %v526, %v529
    %v549 = vsel %vm539, %v535, 1326507024
    %v550 = vsel %vm538, %v532, %v549
    %v551 = vsel %vm537, %v548, %v550
    %v552 = vshll.u32 %v512, 8
    %v553 = vmul.u32.u64.compose %v552, %v551
    %v554 = vextract.low.u32 %v553
    %v555 = vextract.high.u32 %v553
    %v556 = vmul.u32.u64.compose %v552, %v547
    %v557 = vextract.low.u32 %v556
    %v558 = vextract.high.u32 %v556
    %v559 = vmul.u32 %v552, %v543
    %v560 = vadd.s32 %v555, %v557
    %vm561 = vc.u32 %v555, %v557
    %v562 = vadd.s32 %v558, 1
    %v563 = vsel %vm561, %v562, %v558
    %v564 = vadd.s32 %v559, %v563
    %v565 = vadd.s32 %v564, 536870912
    %v566 = vshrl.u32 %v565, 30
    %v567 = vshll.u32 %v566, 30
    %v568 = vsub.s32 %v564, %v567
    %vm569 = vcmp.lt.s32.totalorder %v568, 0
    %v570 = vsub.s32 0, %v568
    %v571 = vsel %vm569, %v570, %v568
    %v572 = vclz %v571
    %v573 = vsub.s32 %v572, 2
    %vm574 = vcmp.gt.s32.totalorder 0, %v573
    %v575 = vsel %vm574, 0, %v573
    %v576 = vsub.s32 32, %v575
    %v577 = vshll.u32 %v568, %v575
    %v578 = vshrl.u32 %v560, %v576
    %v579 = vor.u32 %v577, %v578
    %v580 = vsub.s32 4294967266, %v575
    %v581 = vadd.s32 %v580, 127
    %v582 = vshll.u32 %v581, 23
    %v583 = vor.u32 4788187, %v582
    %v584 = vand.u32 2147483647, %v583
    %v586 = vcvt.s32.f32 %v579
    %v587 = vmul.f32 %v586, %v584
    %v588 = vxor.u32 %v587, 2147483648
    %v589 = vsel %vm506, %v588, %v587
    %v590 = vsub.s32 4, %v566
    %v591 = vsel %vm506, %v590, %v566
    %v592 = vsel %vm505, %v501, %v589
    %v593 = vsel %vm505, 0, %v591
    %v594 = vcosq.f32.pop %v592
    %v595 = vsinq.f32.pop %v592
    %vm596 = vweird.f32 %v501
    %v597 = vadd.s32 %v593, 3
    %v598 = vand.u32 %v597, 3
    %vm599 = vcmp.lt.s32.totalorder %v598, 2
    %vm600 = vcmp.eq.s32.totalorder %v598, 0
    %v601 = vxor.u32 %v595, 2147483648
    %v602 = vsel %vm600, %v594, %v601
    %vm603 = vcmp.eq.s32.totalorder %v598, 2
    %v604 = vxor.u32 %v594, 2147483648
    %v605 = vsel %vm603, %v604, %v595
    %v606 = vsel %vm599, %v602, %v605
    %v607 = vsel %vm596, nan, %v606
    %608 = vst [vmem:[#allocation7] sm:$0xff] %v607
    // Predicated region
    $region18: #{tpu_custom_call.1} parent=1 // pred_check
      _
    $region19: #{tpu_custom_call.1} parent=1 // pred_check_branch
      %610 = sbr.rel (0) target = $region21
    $region20: #{tpu_custom_call.1} parent=1 // pred_region
      %s612 = ssub.s32 128, 128
      %613 = vsyncadd [#allocation4], %s612
      %s615 = sshll.u32 [#allocation7], 4
      %s616 = int_to_ptr.vmem [resolvable:$true] %s615
      %618 = dma.vmem_to_hbm [thread:$0]  %s616, 128, %s2, [#allocation4]
    $region21: #{tpu_custom_call.1} parent=1 // pred_fallthru
      _
    // Predicated region
    $region22: #{tpu_custom_call.1} parent=1 // pred_check
      _
    $region23: #{tpu_custom_call.1} parent=1 // pred_check_branch
      %620 = sbr.rel (0) target = $region25
    $region24: #{tpu_custom_call.1} parent=1 // pred_region
      %621 = dma.done [#allocation4], 128
    $region25: #{tpu_custom_call.1} parent=1 // pred_fallthru
      _
    %622 = vsyncpa [#allocation3], 1
    %623 = vsyncpa [#allocation6], 1
    %624 = vsyncpa [#allocation4], 1

</llo_original>
